<compile_context>
chip_gen: v7x
topology: tpu7x:2x2x1
jax: 0.10.0
libtpu: 0.0.40
codegen_flags: <defaults>
</compile_context>

<pallas_src>
import jax
import jax.numpy as jnp
from jax.experimental import pallas as pl
from jax.experimental.pallas import tpu as pltpu

_LANE = 128
_SUBLANE = 8


def _vmem_capacity_bytes() -> int:
    """Physical VMEM of the attached TPU; falls back to the v7x floor (64 MiB)."""
    try:
        cap = int(pltpu.get_tpu_info().vmem_capacity_bytes)
        if cap > 0:
            return cap
    except Exception:
        pass
    return 64 * 1024 * 1024


def reservoir_kernel(r_ref, w_ref, o_ref):
    # r_ref: (TB, N_V, Dr) VMEM tile of reservoir states
    # w_ref: (N_V, Dr)     VMEM-resident weights (same block every grid step)
    # o_ref: (TB, N_V)     output tile
    r = r_ref[...]
    w = w_ref[...]
    # Per-(batch, node) dot product over Dr: broadcast W over the batch tile,
    # multiply on the VPU, reduce the lane (Dr) axis on the XLU.  No MXU.
    o_ref[...] = jnp.sum(r * w[None, :, :], axis=-1)


def reservoir_forward(r_state2, w_out2, *, block_b=None):
    """output[b, i] = <R_state2[b, i, :], W_out2[i, :]>  -> (B, N_V) float32."""
    r_state2 = r_state2.astype(jnp.float32)
    w_out2 = w_out2.astype(jnp.float32)

    B, N_V, Dr = r_state2.shape
    assert w_out2.shape == (N_V, Dr)

    # ---- generation-aware batch tile -------------------------------------
    vmem_cap = _vmem_capacity_bytes()
    dr_pad = pl.cdiv(Dr, _LANE) * _LANE          # Dr is lane-padded in VMEM
    row_bytes = N_V * dr_pad * 4                 # one batch row of R in VMEM
    if block_b is None:
        # Keep each input buffer <= 1/4 of physical VMEM so the double-buffered
        # pair stays <= 1/2 (v7x: ~272 rows, v5e/v6e: ~544 rows).
        tb = max(1, (vmem_cap // 4) // row_bytes)
        tb = min(tb, B)
        if tb > _SUBLANE:
            tb = (tb // _SUBLANE) * _SUBLANE
    else:
        tb = max(1, min(int(block_b), B))

    grid_b = pl.cdiv(B, tb)
    b_pad = grid_b * tb
    if b_pad != B:
        # Zero-pad the batch so every grid step sees a full tile; padded rows
        # produce zeros and are sliced off below.
        r_state2 = jnp.pad(r_state2, ((0, b_pad - B), (0, 0), (0, 0)))

    # ---- VMEM budget: double-buffered input/output + resident weights ----
    in_bufs = 2 * tb * row_bytes
    w_bufs = 2 * N_V * dr_pad * 4
    out_bufs = 2 * tb * max(N_V, _LANE) * 4
    vmem_limit = min(
        vmem_cap,
        max(32 * 1024 * 1024, in_bufs + w_bufs + out_bufs + (8 << 20)),
    )

    cost = pl.CostEstimate(
        flops=2 * b_pad * N_V * Dr,
        transcendentals=0,
        bytes_accessed=4 * (b_pad * N_V * Dr + N_V * Dr + b_pad * N_V),
    )

    out = pl.pallas_call(
        reservoir_kernel,
        out_shape=jax.ShapeDtypeStruct((b_pad, N_V), jnp.float32),
        grid=(grid_b,),
        in_specs=[
            pl.BlockSpec((tb, N_V, Dr), lambda b: (b, 0, 0)),
            pl.BlockSpec((N_V, Dr), lambda b: (0, 0)),   # constant block: DMA'd once
        ],
        out_specs=pl.BlockSpec((tb, N_V), lambda b: (b, 0)),
        compiler_params=pltpu.CompilerParams(
            dimension_semantics=("parallel",),
            vmem_limit_bytes=int(vmem_limit),
        ),
        cost_estimate=cost,
    )(r_state2, w_out2)

    return out[:B] if b_pad != B else out


if __name__ == "__main__":
    # Module defaults: Dr=300, N_V=40.  Small batch for the example.
    N_V, Dr = 40, 300
    key = jax.random.PRNGKey(0)
    k_r, k_w = jax.random.split(key)

    B = 4
    r_state2 = jax.random.normal(k_r, (B, N_V, Dr), dtype=jnp.float32)
    # PyTorch __init__ zero-inits W_out2; use small random weights so the
    # correctness check is non-trivial.
    w_out2 = jax.random.normal(k_w, (N_V, Dr), dtype=jnp.float32) * 0.01

    ref = jnp.einsum("bid,id->bi", r_state2, w_out2)
    out = jax.block_until_ready(reservoir_forward(r_state2, w_out2))
    assert out.shape == (B, N_V), out.shape
    assert out.dtype == jnp.float32
    assert jnp.allclose(out, ref, atol=1e-4, rtol=1e-4), float(
        jnp.max(jnp.abs(out - ref))
    )

    # Exercise the multi-step (pipelined) grid and the batch-padding path
    # by forcing a small batch tile.
    B2 = 6
    r2 = jax.random.normal(k_r, (B2, N_V, Dr), dtype=jnp.float32)
    ref2 = jnp.einsum("bid,id->bi", r2, w_out2)
    out2 = jax.block_until_ready(reservoir_forward(r2, w_out2, block_b=4))
    assert out2.shape == (B2, N_V), out2.shape
    assert jnp.allclose(out2, ref2, atol=1e-4, rtol=1e-4), float(
        jnp.max(jnp.abs(out2 - ref2))
    )

    print("KERNEL_OK")
</pallas_src>

<mosaic_0001>
module attributes {stable_mosaic.version = 11 : i64} {
  func.func @reservoir_kernel(%arg0: i32, %arg1: memref<4x40x300xf32, #tpu.memory_space<vmem>>, %arg2: memref<40x300xf32, #tpu.memory_space<vmem>>, %arg3: memref<4x40xf32, #tpu.memory_space<vmem>>) attributes {dimension_semantics = [#tpu.dimension_semantics<parallel>], iteration_bounds = array<i64: 1>, scalar_prefetch = 0 : i64, scratch_operands = 0 : i64, tpu.core_type = #tpu.core_type<tc>, window_params = [{transform_indices = @transform_0, window_bounds = array<i64: 4, 40, 300>}, {pipeline_mode = #tpu.pipeline_mode<synchronous>, transform_indices = @transform_1, window_bounds = array<i64: 40, 300>}, {transform_indices = @transform_2, window_bounds = array<i64: 4, 40>}]} {
    %c0 = arith.constant 0 : index
    %c0_0 = arith.constant 0 : index
    %c0_1 = arith.constant 0 : index
    %0 = vector.load %arg1[%c0, %c0_0, %c0_1] : memref<4x40x300xf32, #tpu.memory_space<vmem>>, vector<4x40x300xf32>
    %c0_2 = arith.constant 0 : index
    %c0_3 = arith.constant 0 : index
    %1 = vector.load %arg2[%c0_2, %c0_3] : memref<40x300xf32, #tpu.memory_space<vmem>>, vector<40x300xf32>
    %2 = vector.shape_cast %1 : vector<40x300xf32> to vector<1x40x300xf32>
    %3 = vector.broadcast %2 : vector<1x40x300xf32> to vector<4x40x300xf32>
    %4 = arith.mulf %0, %3 : vector<4x40x300xf32>
    %cst = arith.constant dense<0.000000e+00> : vector<4x40xf32>
    %5 = vector.multi_reduction <add>, %4, %cst [2] : vector<4x40x300xf32> to vector<4x40xf32>
    %c0_4 = arith.constant 0 : index
    %c0_5 = arith.constant 0 : index
    %6 = vector.load %arg3[%c0_4, %c0_5] : memref<4x40xf32, #tpu.memory_space<vmem>>, vector<4x40xf32>
    tpu.vector_store %arg3[%c0_4, %c0_5], %5 {strides = array<i32>} : memref<4x40xf32, #tpu.memory_space<vmem>>, vector<4x40xf32>,
    return
  }
  func.func @transform_0(%arg0: i32) -> (i32, i32, i32) {
    %c0_i32 = arith.constant 0 : i32
    %c0_i32_0 = arith.constant 0 : i32
    %c0_i32_1 = arith.constant 0 : i32
    return %arg0, %c0_i32, %c0_i32_0 : i32, i32, i32
  }
  func.func @transform_1(%arg0: i32) -> (i32, i32) {
    %c0_i32 = arith.constant 0 : i32
    %c0_i32_0 = arith.constant 0 : i32
    %c0_i32_1 = arith.constant 0 : i32
    return %c0_i32, %c0_i32_0 : i32, i32
  }
  func.func @transform_2(%arg0: i32) -> (i32, i32) {
    %c0_i32 = arith.constant 0 : i32
    %c0_i32_0 = arith.constant 0 : i32
    return %arg0, %c0_i32 : i32, i32
  }
}

</mosaic_0001>

<llo_original>
// kernel: tpu_custom_call.1
$region0: #{tpu_custom_call.1}
  #allocation0 [shape = 'u32[]', space=smem, size = 0x4, offset = 0x4, fixed_abs, tag = 'smem constant byte address 0x4 - core index']
  #allocation1 [shape = 'u32[144,128]{1,0:T(1,128)}', space=vmem, size = 0x12000, scoped, tag = 'internal scratch']
  %s0 = inlined_call_operand.hbm [shape: f32[4,40,300], index: 0, kind: input, shape index: {}]
  %s1 = inlined_call_operand.hbm [shape: f32[40,300], index: 1, kind: input, shape index: {}]
  %s2 = inlined_call_operand.hbm [shape: f32[4,40], index: 2, kind: output, shape index: {}]
  %s3 = sld [smem:[#allocation0]]
  $region26: #{tpu_custom_call.1} parent=0
    _
  %s5 = ssub.s32 1, %s3
  %s6 = scalar_select 0, %s5, %s3
  $region1: #{tpu_custom_call.1} parent=0
    #allocation2 [shape = 'u8[245760]{0}', space=vmem, size = 0x3c000, scoped, tag = 'input window, operand 0, single buffered']
    #allocation3 [shape = 's32[1]{0}', space=sflag, size = 0x4, scoped, tag = 'scoped memory for tpu_custom_call.1']
    #allocation4 [shape = 's32[1]{0}', space=sflag, size = 0x4, scoped, tag = 'scoped memory for tpu_custom_call.1']
    #allocation5 [shape = 'u8[61440]{0}', space=vmem, size = 0xf000, scoped, tag = 'input window, operand 1, single buffered']
    #allocation6 [shape = 's32[1]{0}', space=sflag, size = 0x4, scoped, tag = 'scoped memory for tpu_custom_call.1']
    #allocation7 [shape = 'u8[2048]{0}', space=vmem, size = 0x800, scoped, tag = 'output window, operand 0, single buffered']
    %7 = vsyncpa [#allocation3], 0
    %8 = vsyncpa [#allocation6], 0
    %9 = vsyncpa [#allocation4], 0
    // Predicated region
    $region2: #{tpu_custom_call.1} parent=1 // pred_check
      _
    $region3: #{tpu_custom_call.1} parent=1 // pred_check_branch
      %11 = sbr.rel (0) target = $region5
    $region4: #{tpu_custom_call.1} parent=1 // pred_region
      %s13 = ssub.s32 7680, 7680
      %14 = vsyncadd [#allocation3], %s13
      %s15 = sshll.u32 [#allocation2], 4
      %s16 = int_to_ptr.vmem [resolvable:$true] %s15
      %21 = dma.hbm_to_vmem [thread:$0]  %s0, 7680, %s16, [#allocation3], 384, 384, 24
    $region5: #{tpu_custom_call.1} parent=1 // pred_fallthru
      _
    // Predicated region
    $region6: #{tpu_custom_call.1} parent=1 // pred_check
      _
    $region7: #{tpu_custom_call.1} parent=1 // pred_check_branch
      %23 = sbr.rel (0) target = $region9
    $region8: #{tpu_custom_call.1} parent=1 // pred_region
      %s25 = ssub.s32 1920, 1920
      %26 = vsyncadd [#allocation6], %s25
      %s27 = sshll.u32 [#allocation5], 4
      %s28 = int_to_ptr.vmem [resolvable:$true] %s27
      %33 = dma.hbm_to_vmem [thread:$0]  %s1, 1920, %s28, [#allocation6], 384, 384, 24
    $region9: #{tpu_custom_call.1} parent=1 // pred_fallthru
      _
    // Predicated region
    $region10: #{tpu_custom_call.1} parent=1 // pred_check
      _
    $region11: #{tpu_custom_call.1} parent=1 // pred_check_branch
      %35 = sbr.rel (0) target = $region13
    $region12: #{tpu_custom_call.1} parent=1 // pred_region
      %36 = dma.done [#allocation3], 7680
    $region13: #{tpu_custom_call.1} parent=1 // pred_fallthru
      _
    // Predicated region
    $region14: #{tpu_custom_call.1} parent=1 // pred_check
      _
    $region15: #{tpu_custom_call.1} parent=1 // pred_check_branch
      %38 = sbr.rel (0) target = $region17
    $region16: #{tpu_custom_call.1} parent=1 // pred_region
      %39 = dma.done [#allocation6], 1920
    $region17: #{tpu_custom_call.1} parent=1 // pred_fallthru
      _
    %v40 = vld [vmem:[#allocation2] sm:$0xff]
    %v41 = vld [vmem:[#allocation2 + $0x8] sm:$0xff]
    %v42 = vld [vmem:[#allocation2 + $0x10] sm:$0xff]
    %v43 = vld [vmem:[#allocation2 + $0x18] sm:$0xff]
    %v44 = vld [vmem:[#allocation2 + $0x20] sm:$0xff]
    %v45 = vld [vmem:[#allocation2 + $0x28] sm:$0xff]
    %v46 = vld [vmem:[#allocation2 + $0x30] sm:$0xff]
    %v47 = vld [vmem:[#allocation2 + $0x38] sm:$0xff]
    %v48 = vld [vmem:[#allocation2 + $0x40] sm:$0xff]
    %v49 = vld [vmem:[#allocation2 + $0x48] sm:$0xff]
    %v50 = vld [vmem:[#allocation2 + $0x50] sm:$0xff]
    %v51 = vld [vmem:[#allocation2 + $0x58] sm:$0xff]
    %v52 = vld [vmem:[#allocation2 + $0x60] sm:$0xff]
    %v53 = vld [vmem:[#allocation2 + $0x68] sm:$0xff]
    %v54 = vld [vmem:[#allocation2 + $0x70] sm:$0xff]
    %v55 = vld [vmem:[#allocation2 + $0x78] sm:$0xff]
    %v56 = vld [vmem:[#allocation2 + $0x80] sm:$0xff]
    %v57 = vld [vmem:[#allocation2 + $0x88] sm:$0xff]
    %v58 = vld [vmem:[#allocation2 + $0x90] sm:$0xff]
    %v59 = vld [vmem:[#allocation2 + $0x98] sm:$0xff]
    %v60 = vld [vmem:[#allocation2 + $0xa0] sm:$0xff]
    %v61 = vld [vmem:[#allocation2 + $0xa8] sm:$0xff]
    %v62 = vld [vmem:[#allocation2 + $0xb0] sm:$0xff]
    %v63 = vld [vmem:[#allocation2 + $0xb8] sm:$0xff]
    %v64 = vld [vmem:[#allocation2 + $0xc0] sm:$0xff]
    %v65 = vld [vmem:[#allocation2 + $0xc8] sm:$0xff]
    %v66 = vld [vmem:[#allocation2 + $0xd0] sm:$0xff]
    %v67 = vld [vmem:[#allocation2 + $0xd8] sm:$0xff]
    %v68 = vld [vmem:[#allocation2 + $0xe0] sm:$0xff]
    %v69 = vld [vmem:[#allocation2 + $0xe8] sm:$0xff]
    %v70 = vld [vmem:[#allocation2 + $0xf0] sm:$0xff]
    %v71 = vld [vmem:[#allocation2 + $0xf8] sm:$0xff]
    %v72 = vld [vmem:[#allocation2 + $0x100] sm:$0xff]
    %v73 = vld [vmem:[#allocation2 + $0x108] sm:$0xff]
    %v74 = vld [vmem:[#allocation2 + $0x110] sm:$0xff]
    %v75 = vld [vmem:[#allocation2 + $0x118] sm:$0xff]
    %v76 = vld [vmem:[#allocation2 + $0x120] sm:$0xff]
    %v77 = vld [vmem:[#allocation2 + $0x128] sm:$0xff]
    %v78 = vld [vmem:[#allocation2 + $0x130] sm:$0xff]
    %v79 = vld [vmem:[#allocation2 + $0x138] sm:$0xff]
    %v80 = vld [vmem:[#allocation2 + $0x140] sm:$0xff]
    %v81 = vld [vmem:[#allocation2 + $0x148] sm:$0xff]
    %v82 = vld [vmem:[#allocation2 + $0x150] sm:$0xff]
    %v83 = vld [vmem:[#allocation2 + $0x158] sm:$0xff]
    %v84 = vld [vmem:[#allocation2 + $0x160] sm:$0xff]
    %v85 = vld [vmem:[#allocation2 + $0x168] sm:$0xff]
    %v86 = vld [vmem:[#allocation2 + $0x170] sm:$0xff]
    %v87 = vld [vmem:[#allocation2 + $0x178] sm:$0xff]
    %v88 = vld [vmem:[#allocation2 + $0x180] sm:$0xff]
    %v89 = vld [vmem:[#allocation2 + $0x188] sm:$0xff]
    %v90 = vld [vmem:[#allocation2 + $0x190] sm:$0xff]
    %v91 = vld [vmem:[#allocation2 + $0x198] sm:$0xff]
    %v92 = vld [vmem:[#allocation2 + $0x1a0] sm:$0xff]
    %v93 = vld [vmem:[#allocation2 + $0x1a8] sm:$0xff]
    %v94 = vld [vmem:[#allocation2 + $0x1b0] sm:$0xff]
    %v95 = vld [vmem:[#allocation2 + $0x1b8] sm:$0xff]
    %v96 = vld [vmem:[#allocation2 + $0x1c0] sm:$0xff]
    %v97 = vld [vmem:[#allocation2 + $0x1c8] sm:$0xff]
    %v98 = vld [vmem:[#allocation2 + $0x1d0] sm:$0xff]
    %v99 = vld [vmem:[#allocation2 + $0x1d8] sm:$0xff]
    %v100 = vld [vmem:[#allocation5] sm:$0xff]
    %v101 = vld [vmem:[#allocation5 + $0x8] sm:$0xff]
    %v102 = vld [vmem:[#allocation5 + $0x10] sm:$0xff]
    %v103 = vld [vmem:[#allocation5 + $0x18] sm:$0xff]
    %v104 = vld [vmem:[#allocation5 + $0x20] sm:$0xff]
    %v105 = vld [vmem:[#allocation5 + $0x28] sm:$0xff]
    %v106 = vld [vmem:[#allocation5 + $0x30] sm:$0xff]
    %v107 = vld [vmem:[#allocation5 + $0x38] sm:$0xff]
    %v108 = vld [vmem:[#allocation5 + $0x40] sm:$0xff]
    %v109 = vld [vmem:[#allocation5 + $0x48] sm:$0xff]
    %v110 = vld [vmem:[#allocation5 + $0x50] sm:$0xff]
    %v111 = vld [vmem:[#allocation5 + $0x58] sm:$0xff]
    %v112 = vld [vmem:[#allocation5 + $0x60] sm:$0xff]
    %v113 = vld [vmem:[#allocation5 + $0x68] sm:$0xff]
    %v114 = vld [vmem:[#allocation5 + $0x70] sm:$0xff]
    %v115 = vmul.f32 %v40, %v100
    %v116 = vmul.f32 %v41, %v101
    %v117 = vmul.f32 %v42, %v102
    %v118 = vmul.f32 %v43, %v103
    %v119 = vmul.f32 %v44, %v104
    %v120 = vmul.f32 %v45, %v105
    %v121 = vmul.f32 %v46, %v106
    %v122 = vmul.f32 %v47, %v107
    %v123 = vmul.f32 %v48, %v108
    %v124 = vmul.f32 %v49, %v109
    %v125 = vmul.f32 %v50, %v110
    %v126 = vmul.f32 %v51, %v111
    %v127 = vmul.f32 %v52, %v112
    %v128 = vmul.f32 %v53, %v113
    %v129 = vmul.f32 %v54, %v114
    %v130 = vmul.f32 %v55, %v100
    %v131 = vmul.f32 %v56, %v101
    %v132 = vmul.f32 %v57, %v102
    %v133 = vmul.f32 %v58, %v103
    %v134 = vmul.f32 %v59, %v104
    %v135 = vmul.f32 %v60, %v105
    %v136 = vmul.f32 %v61, %v106
    %v137 = vmul.f32 %v62, %v107
    %v138 = vmul.f32 %v63, %v108
    %v139 = vmul.f32 %v64, %v109
    %v140 = vmul.f32 %v65, %v110
    %v141 = vmul.f32 %v66, %v111
    %v142 = vmul.f32 %v67, %v112
    %v143 = vmul.f32 %v68, %v113
    %v144 = vmul.f32 %v69, %v114
    %v145 = vmul.f32 %v70, %v100
    %v146 = vmul.f32 %v71, %v101
    %v147 = vmul.f32 %v72, %v102
    %v148 = vmul.f32 %v73, %v103
    %v149 = vmul.f32 %v74, %v104
    %v150 = vmul.f32 %v75, %v105
    %v151 = vmul.f32 %v76, %v106
    %v152 = vmul.f32 %v77, %v107
    %v153 = vmul.f32 %v78, %v108
    %v154 = vmul.f32 %v79, %v109
    %v155 = vmul.f32 %v80, %v110
    %v156 = vmul.f32 %v81, %v111
    %v157 = vmul.f32 %v82, %v112
    %v158 = vmul.f32 %v83, %v113
    %v159 = vmul.f32 %v84, %v114
    %v160 = vmul.f32 %v85, %v100
    %v161 = vmul.f32 %v86, %v101
    %v162 = vmul.f32 %v87, %v102
    %v163 = vmul.f32 %v88, %v103
    %v164 = vmul.f32 %v89, %v104
    %v165 = vmul.f32 %v90, %v105
    %v166 = vmul.f32 %v91, %v106
    %v167 = vmul.f32 %v92, %v107
    %v168 = vmul.f32 %v93, %v108
    %v169 = vmul.f32 %v94, %v109
    %v170 = vmul.f32 %v95, %v110
    %v171 = vmul.f32 %v96, %v111
    %v172 = vmul.f32 %v97, %v112
    %v173 = vmul.f32 %v98, %v113
    %v174 = vmul.f32 %v99, %v114
    %v175 = vadd.f32 %v115, %v116
    %vm176 = vcmask 359424
    %v177 = vsel %vm176, %v117, 0.0
    %v178 = vadd.f32 %v175, %v177
    %179 = vadd.xlane.f32.xlu0 %v178
    %v180 = vpop.xlane.xlu0 %179
    %v181 = vadd.f32 %v118, %v119
    %v182 = vsel %vm176, %v120, 0.0
    %v183 = vadd.f32 %v181, %v182
    %184 = vadd.xlane.f32.xlu0 %v183
    %v185 = vpop.xlane.xlu0 %184
    %v186 = vadd.f32 %v121, %v122
    %v187 = vsel %vm176, %v123, 0.0
    %v188 = vadd.f32 %v186, %v187
    %189 = vadd.xlane.f32.xlu0 %v188
    %v190 = vpop.xlane.xlu0 %189
    %v191 = vadd.f32 %v124, %v125
    %v192 = vsel %vm176, %v126, 0.0
    %v193 = vadd.f32 %v191, %v192
    %194 = vadd.xlane.f32.xlu0 %v193
    %v195 = vpop.xlane.xlu0 %194
    %v196 = vadd.f32 %v127, %v128
    %v197 = vsel %vm176, %v129, 0.0
    %v198 = vadd.f32 %v196, %v197
    %199 = vadd.xlane.f32.xlu0 %v198
    %v200 = vpop.xlane.xlu0 %199
    %v201 = vadd.f32 %v130, %v131
    %v202 = vsel %vm176, %v132, 0.0
    %v203 = vadd.f32 %v201, %v202
    %204 = vadd.xlane.f32.xlu0 %v203
    %v205 = vpop.xlane.xlu0 %204
    %v206 = vadd.f32 %v133, %v134
    %v207 = vsel %vm176, %v135, 0.0
    %v208 = vadd.f32 %v206, %v207
    %209 = vadd.xlane.f32.xlu0 %v208
    %v210 = vpop.xlane.xlu0 %209
    %v211 = vadd.f32 %v136, %v137
    %v212 = vsel %vm176, %v138, 0.0
    %v213 = vadd.f32 %v211, %v212
    %214 = vadd.xlane.f32.xlu0 %v213
    %v215 = vpop.xlane.xlu0 %214
    %v216 = vadd.f32 %v139, %v140
    %v217 = vsel %vm176, %v141, 0.0
    %v218 = vadd.f32 %v216, %v217
    %219 = vadd.xlane.f32.xlu0 %v218
    %v220 = vpop.xlane.xlu0 %219
    %v221 = vadd.f32 %v142, %v143
    %v222 = vsel %vm176, %v144, 0.0
    %v223 = vadd.f32 %v221, %v222
    %224 = vadd.xlane.f32.xlu0 %v223
    %v225 = vpop.xlane.xlu0 %224
    %v226 = vadd.f32 %v145, %v146
    %v227 = vsel %vm176, %v147, 0.0
    %v228 = vadd.f32 %v226, %v227
    %229 = vadd.xlane.f32.xlu0 %v228
    %v230 = vpop.xlane.xlu0 %229
    %v231 = vadd.f32 %v148, %v149
    %v232 = vsel %vm176, %v150, 0.0
    %v233 = vadd.f32 %v231, %v232
    %234 = vadd.xlane.f32.xlu0 %v233
    %v235 = vpop.xlane.xlu0 %234
    %v236 = vadd.f32 %v151, %v152
    %v237 = vsel %vm176, %v153, 0.0
    %v238 = vadd.f32 %v236, %v237
    %239 = vadd.xlane.f32.xlu0 %v238
    %v240 = vpop.xlane.xlu0 %239
    %v241 = vadd.f32 %v154, %v155
    %v242 = vsel %vm176, %v156, 0.0
    %v243 = vadd.f32 %v241, %v242
    %244 = vadd.xlane.f32.xlu0 %v243
    %v245 = vpop.xlane.xlu0 %244
    %v246 = vadd.f32 %v157, %v158
    %v247 = vsel %vm176, %v159, 0.0
    %v248 = vadd.f32 %v246, %v247
    %249 = vadd.xlane.f32.xlu0 %v248
    %v250 = vpop.xlane.xlu0 %249
    %v251 = vadd.f32 %v160, %v161
    %v252 = vsel %vm176, %v162, 0.0
    %v253 = vadd.f32 %v251, %v252
    %254 = vadd.xlane.f32.xlu0 %v253
    %v255 = vpop.xlane.xlu0 %254
    %v256 = vadd.f32 %v163, %v164
    %v257 = vsel %vm176, %v165, 0.0
    %v258 = vadd.f32 %v256, %v257
    %259 = vadd.xlane.f32.xlu0 %v258
    %v260 = vpop.xlane.xlu0 %259
    %v261 = vadd.f32 %v166, %v167
    %v262 = vsel %vm176, %v168, 0.0
    %v263 = vadd.f32 %v261, %v262
    %264 = vadd.xlane.f32.xlu0 %v263
    %v265 = vpop.xlane.xlu0 %264
    %v266 = vadd.f32 %v169, %v170
    %v267 = vsel %vm176, %v171, 0.0
    %v268 = vadd.f32 %v266, %v267
    %269 = vadd.xlane.f32.xlu0 %v268
    %v270 = vpop.xlane.xlu0 %269
    %v271 = vadd.f32 %v172, %v173
    %v272 = vsel %vm176, %v174, 0.0
    %v273 = vadd.f32 %v271, %v272
    %274 = vadd.xlane.f32.xlu0 %v273
    %v275 = vpop.xlane.xlu0 %274
    %v296 = vlaneseq
    %v297 = vand.u32 %v296, 127
    %v298 = vlaneseq
    %v299 = vshrl.u32 %v298, 7
    %v300 = vsub.s32 %v297, %v299
    %v301 = vrot.slane %v180, %v300
    %v302 = vadd.s32 %v297, 4294967288
    %v303 = vlaneseq
    %v304 = vshrl.u32 %v303, 7
    %v305 = vsub.s32 %v302, %v304
    %v306 = vrot.slane %v185, %v305
    %vm307 = vcmask 130112
    %v308 = vsel %vm307, %v306, %v301
    %v309 = vadd.s32 %v297, 4294967280
    %v310 = vlaneseq
    %v311 = vshrl.u32 %v310, 7
    %v312 = vsub.s32 %v309, %v311
    %v313 = vrot.slane %v190, %v312
    %vm314 = vcmask 195712
    %v315 = vsel %vm314, %v313, %v308
    %v316 = vadd.s32 %v297, 4294967272
    %v317 = vlaneseq
    %v318 = vshrl.u32 %v317, 7
    %v319 = vsub.s32 %v316, %v318
    %v320 = vrot.slane %v195, %v319
    %vm321 = vcmask 261312
    %v322 = vsel %vm321, %v320, %v315
    %v323 = vadd.s32 %v297, 4294967264
    %v324 = vlaneseq
    %v325 = vshrl.u32 %v324, 7
    %v326 = vsub.s32 %v323, %v325
    %v327 = vrot.slane %v200, %v326
    %vm328 = vcmask 326912
    %v329 = vsel %vm328, %v327, %v322
    %v330 = vlaneseq
    %v331 = vshrl.u32 %v330, 7
    %v332 = vsub.s32 %v297, %v331
    %v333 = vrot.slane %v205, %v332
    %v334 = vlaneseq
    %v335 = vshrl.u32 %v334, 7
    %v336 = vsub.s32 %v302, %v335
    %v337 = vrot.slane %v210, %v336
    %v338 = vsel %vm307, %v337, %v333
    %v339 = vlaneseq
    %v340 = vshrl.u32 %v339, 7
    %v341 = vsub.s32 %v309, %v340
    %v342 = vrot.slane %v215, %v341
    %v343 = vsel %vm314, %v342, %v338
    %v344 = vlaneseq
    %v345 = vshrl.u32 %v344, 7
    %v346 = vsub.s32 %v316, %v345
    %v347 = vrot.slane %v220, %v346
    %v348 = vsel %vm321, %v347, %v343
    %v349 = vlaneseq
    %v350 = vshrl.u32 %v349, 7
    %v351 = vsub.s32 %v323, %v350
    %v352 = vrot.slane %v225, %v351
    %v353 = vsel %vm328, %v352, %v348
    %v354 = vlaneseq
    %v355 = vshrl.u32 %v354, 7
    %v356 = vsub.s32 %v297, %v355
    %v357 = vrot.slane %v230, %v356
    %v358 = vlaneseq
    %v359 = vshrl.u32 %v358, 7
    %v360 = vsub.s32 %v302, %v359
    %v361 = vrot.slane %v235, %v360
    %v362 = vsel %vm307, %v361, %v357
    %v363 = vlaneseq
    %v364 = vshrl.u32 %v363, 7
    %v365 = vsub.s32 %v309, %v364
    %v366 = vrot.slane %v240, %v365
    %v367 = vsel %vm314, %v366, %v362
    %v368 = vlaneseq
    %v369 = vshrl.u32 %v368, 7
    %v370 = vsub.s32 %v316, %v369
    %v371 = vrot.slane %v245, %v370
    %v372 = vsel %vm321, %v371, %v367
    %v373 = vlaneseq
    %v374 = vshrl.u32 %v373, 7
    %v375 = vsub.s32 %v323, %v374
    %v376 = vrot.slane %v250, %v375
    %v377 = vsel %vm328, %v376, %v372
    %v378 = vlaneseq
    %v379 = vshrl.u32 %v378, 7
    %v380 = vsub.s32 %v297, %v379
    %v381 = vrot.slane %v255, %v380
    %v382 = vlaneseq
    %v383 = vshrl.u32 %v382, 7
    %v384 = vsub.s32 %v302, %v383
    %v385 = vrot.slane %v260, %v384
    %v386 = vsel %vm307, %v385, %v381
    %v387 = vlaneseq
    %v388 = vshrl.u32 %v387, 7
    %v389 = vsub.s32 %v309, %v388
    %v390 = vrot.slane %v265, %v389
    %v391 = vsel %vm314, %v390, %v386
    %v392 = vlaneseq
    %v393 = vshrl.u32 %v392, 7
    %v394 = vsub.s32 %v316, %v393
    %v395 = vrot.slane %v270, %v394
    %v396 = vsel %vm321, %v395, %v391
    %v397 = vlaneseq
    %v398 = vshrl.u32 %v397, 7
    %v399 = vsub.s32 %v323, %v398
    %v400 = vrot.slane %v275, %v399
    %v401 = vsel %vm328, %v400, %v396
    %vm402 = vcmask 1041409
    %v403 = vsel %vm402, %v353, %v329
    %vm404 = vcmask 1042434
    %v405 = vsel %vm404, %v377, %v403
    %vm406 = vcmask 1043459
    %v407 = vsel %vm406, %v401, %v405
    %vm409 = vcmask 322560
    %410 = vst.msk [vmem:[#allocation7] sm:$0xf] %vm409, %v407
    // Predicated region
    $region18: #{tpu_custom_call.1} parent=1 // pred_check
      _
    $region19: #{tpu_custom_call.1} parent=1 // pred_check_branch
      %412 = sbr.rel (0) target = $region21
    $region20: #{tpu_custom_call.1} parent=1 // pred_region
      %s414 = ssub.s32 64, 64
      %415 = vsyncadd [#allocation4], %s414
      %s417 = sshll.u32 [#allocation7], 4
      %s418 = int_to_ptr.vmem [resolvable:$true] %s417
      %420 = dma.vmem_to_hbm [thread:$0]  %s418, 64, %s2, [#allocation4]
    $region21: #{tpu_custom_call.1} parent=1 // pred_fallthru
      _
    // Predicated region
    $region22: #{tpu_custom_call.1} parent=1 // pred_check
      _
    $region23: #{tpu_custom_call.1} parent=1 // pred_check_branch
      %422 = sbr.rel (0) target = $region25
    $region24: #{tpu_custom_call.1} parent=1 // pred_region
      %423 = dma.done [#allocation4], 64
    $region25: #{tpu_custom_call.1} parent=1 // pred_fallthru
      _
    %424 = vsyncpa [#allocation3], 1
    %425 = vsyncpa [#allocation6], 1
    %426 = vsyncpa [#allocation4], 1

</llo_original>
